<compile_context>
chip_gen: v5e
topology: v5e:2x2
jax: 0.10.0
libtpu: 0.0.40
codegen_flags: <defaults>
</compile_context>

<pallas_src>
import jax
import jax.numpy as jnp
from jax.experimental import pallas as pl
from jax.experimental.pallas import tpu as pltpu

BN_EPS = 1e-5
_NEG_BIG = -1e30  # bias for padded cluster columns: exp underflows to exactly 0


def _round_up(x, m):
    return (x + m - 1) // m * m


def ddc_kernel(x_ref, w1_ref, b1_ref, gamma_ref, beta_ref, w2_ref, b2_ref,
               y_ref, h_ref, logits_acc):
    j = pl.program_id(0)

    @pl.when(j == 0)
    def _():
        logits_acc[...] = jnp.zeros_like(logits_acc)

    # ---- hidden layer tile: Linear -> ReLU -> BatchNorm1d (batch stats) ----
    # x / w1 are bf16; MXU accumulates in f32.
    z = jnp.dot(x_ref[...], w1_ref[...],
                preferred_element_type=jnp.float32) + b1_ref[...]
    a = jnp.maximum(z, 0.0)                                   # ReLU, (B, tH) f32

    # Single-pass BN stats: column sums of a and a*a via the MXU
    # (ones(1,B) @ .), so the B-reduction rides the matmul slot instead of
    # the VPU/XLU.  var = E[a^2] - mean^2 (clamped for f32 cancellation).
    b = a.shape[0]
    ones_row = jnp.ones((1, b), jnp.float32)
    s1 = jnp.dot(ones_row, a, preferred_element_type=jnp.float32)       # (1, tH)
    s2 = jnp.dot(ones_row, a * a, preferred_element_type=jnp.float32)   # (1, tH)
    inv_b = 1.0 / b
    mean = s1 * inv_b
    var = jnp.maximum(s2 * inv_b - mean * mean, 0.0)
    h = (a - mean) * jax.lax.rsqrt(var + BN_EPS) * gamma_ref[...] + beta_ref[...]
    h_ref[...] = h.astype(h_ref.dtype)                        # lane-dense store

    # ---- clustering layer: accumulate logits over H tiles (K-reduction) ----
    logits_acc[...] += jnp.dot(h.astype(jnp.bfloat16), w2_ref[...],
                               preferred_element_type=jnp.float32)

    @pl.when(j == pl.num_programs(0) - 1)
    def _():
        logits = logits_acc[...] + b2_ref[...]   # padded cols get -1e30 bias
        m = jnp.max(logits, axis=1, keepdims=True)
        e = jnp.exp(logits - m)
        denom = jnp.sum(e, axis=1, keepdims=True)
        y = e * pl.reciprocal(denom, approx=True)             # EUP vrcp
        y_ref[...] = y.astype(y_ref.dtype)                    # lane-dense store


def _build_call(B, F, Hpad, Cpad, block_h, h_dtype, buffer_resident_once):
    n_tiles = Hpad // block_h

    def resident_spec(shape):
        # Grid-invariant block: double-buffering it is pure wasted VMEM.
        if buffer_resident_once:
            return pl.BlockSpec(shape, lambda j: (0, 0),
                                pipeline_mode=pl.Buffered(1))
        return pl.BlockSpec(shape, lambda j: (0, 0))

    in_specs = [
        resident_spec((B, F)),                             # x  (resident)
        pl.BlockSpec((F, block_h), lambda j: (0, j)),      # w1 column tile
        pl.BlockSpec((1, block_h), lambda j: (0, j)),      # b1
        pl.BlockSpec((1, block_h), lambda j: (0, j)),      # gamma
        pl.BlockSpec((1, block_h), lambda j: (0, j)),      # beta
        pl.BlockSpec((block_h, Cpad), lambda j: (j, 0)),   # w2 row tile
        resident_spec((1, Cpad)),                          # b2 (resident)
    ]
    out_specs = (
        pl.BlockSpec((B, Cpad), lambda j: (0, 0)),         # y (written last step)
        pl.BlockSpec((B, block_h), lambda j: (0, j)),      # h column tile
    )
    out_shape = (jax.ShapeDtypeStruct((B, Cpad), jnp.float32),
                 jax.ShapeDtypeStruct((B, Hpad), h_dtype))

    return pl.pallas_call(
        ddc_kernel,
        grid=(n_tiles,),
        in_specs=in_specs,
        out_specs=out_specs,
        out_shape=out_shape,
        scratch_shapes=[pltpu.VMEM((B, Cpad), jnp.float32)],   # logits accumulator
        compiler_params=pltpu.CompilerParams(
            # The H axis is the K-reduction of the clustering matmul.
            dimension_semantics=("arbitrary",),
            vmem_limit_bytes=48 * 1024 * 1024,
        ),
    )


def ddc_forward(x, w1, b1, gamma, beta, w2, b2, *, block_h=128,
                h_dtype=jnp.float32):
    """DDCModule forward. Returns (y, h) like the PyTorch module.

    Note on MXU utilization: with B=8 the matmul M-dimension uses <5% of the
    systolic array; callers should stack batches so M >= 128.  Zero-padding B
    inside this wrapper is NOT done because it would corrupt the BatchNorm
    batch statistics.  (A further v7x option is splitting into two
    parallel-gridded pallas_calls, one per stage, to use both TensorCores.)
    """
    B, F = x.shape
    H = w1.shape[1]
    C = w2.shape[1]
    assert block_h % 128 == 0, "block_h must be lane-aligned (multiple of 128)"

    Hpad = _round_up(H, block_h)
    Cpad = _round_up(C, 128)

    # One-time host-side prep (in production done once on the weights, not per
    # call): pad H / C to lane-dense multiples of 128 and cast the matmul
    # operands to bf16 (halves weight/x DMA bytes; f32 accumulation in-kernel).
    x_p = x.astype(jnp.bfloat16)
    w1_p = jnp.pad(w1, ((0, 0), (0, Hpad - H))).astype(jnp.bfloat16)
    b1_p = jnp.pad(b1, ((0, 0), (0, Hpad - H)))
    gamma_p = jnp.pad(gamma, ((0, 0), (0, Hpad - H)), constant_values=1.0)
    beta_p = jnp.pad(beta, ((0, 0), (0, Hpad - H)))
    w2_p = jnp.pad(w2, ((0, Hpad - H), (0, Cpad - C))).astype(jnp.bfloat16)
    b2_p = jnp.pad(b2, ((0, 0), (0, Cpad - C)), constant_values=_NEG_BIG)

    args = (x_p, w1_p, b1_p, gamma_p, beta_p, w2_p, b2_p)
    try:
        y_p, h_p = _build_call(B, F, Hpad, Cpad, block_h, h_dtype, True)(*args)
        jax.block_until_ready((y_p, h_p))
    except Exception:
        # pipeline_mode=pl.Buffered(1) hint not supported by this jax version;
        # fall back to default double-buffering.
        y_p, h_p = _build_call(B, F, Hpad, Cpad, block_h, h_dtype, False)(*args)

    return y_p[:, :C], h_p[:, :H]


def init_params(key, in_features, hidden_dim, num_cluster):
    k1, k2, k3, k4 = jax.random.split(key, 4)
    # PyTorch Linear default init: U(-1/sqrt(fan_in), 1/sqrt(fan_in))
    lim1 = 1.0 / jnp.sqrt(in_features)
    lim2 = 1.0 / jnp.sqrt(hidden_dim)
    w1 = jax.random.uniform(k1, (in_features, hidden_dim), jnp.float32, -lim1, lim1)
    b1 = jax.random.uniform(k2, (1, hidden_dim), jnp.float32, -lim1, lim1)
    gamma = jnp.ones((1, hidden_dim), jnp.float32)   # BatchNorm1d weight init
    beta = jnp.zeros((1, hidden_dim), jnp.float32)   # BatchNorm1d bias init
    w2 = jax.random.uniform(k3, (hidden_dim, num_cluster), jnp.float32, -lim2, lim2)
    b2 = jax.random.uniform(k4, (1, num_cluster), jnp.float32, -lim2, lim2)
    return w1, b1, gamma, beta, w2, b2


def ddc_reference(x, w1, b1, gamma, beta, w2, b2, *, match_kernel_precision=False):
    """Pure-JAX reference. match_kernel_precision=True mirrors the kernel's
    bf16 matmul operands and one-pass variance formula for a tight check."""
    if match_kernel_precision:
        dot = lambda a, b: jnp.dot(a.astype(jnp.bfloat16), b.astype(jnp.bfloat16),
                                   preferred_element_type=jnp.float32)
    else:
        dot = lambda a, b: jnp.dot(a, b, preferred_element_type=jnp.float32)
    z = dot(x, w1) + b1
    a = jnp.maximum(z, 0.0)
    mean = jnp.mean(a, axis=0, keepdims=True)
    if match_kernel_precision:
        var = jnp.maximum(jnp.mean(a * a, axis=0, keepdims=True) - mean * mean, 0.0)
    else:
        var = jnp.mean((a - mean) ** 2, axis=0, keepdims=True)
    h = (a - mean) * jax.lax.rsqrt(var + BN_EPS) * gamma + beta
    logits = dot(h, w2) + b2
    y = jax.nn.softmax(logits, axis=1)
    return y, h


if __name__ == "__main__":
    in_features, hidden_dim, num_cluster = 16, 32, 8
    batch = 8

    key = jax.random.PRNGKey(0)
    kx, kp = jax.random.split(key)
    x = jax.random.normal(kx, (batch, in_features), jnp.float32)
    params = init_params(kp, in_features, hidden_dim, num_cluster)

    y, h = ddc_forward(x, *params)
    jax.block_until_ready((y, h))

    # Tight check against same-precision math (validates kernel structure).
    y_m, h_m = ddc_reference(x, *params, match_kernel_precision=True)
    # Loose check against full-f32 PyTorch-equivalent math (bf16/approx-rcp
    # relaxations must stay small).
    y_f, _ = ddc_reference(x, *params, match_kernel_precision=False)

    assert y.shape == (batch, num_cluster) and h.shape == (batch, hidden_dim)
    assert jnp.allclose(h, h_m, atol=1e-2, rtol=1e-2)
    assert jnp.allclose(y, y_m, atol=1e-2, rtol=1e-2)
    assert jnp.allclose(y, y_f, atol=2e-2, rtol=2e-2)
    assert jnp.allclose(jnp.sum(y, axis=1), 1.0, atol=1e-2)

    print("KERNEL_OK")
</pallas_src>

<mosaic_0001>
module attributes {stable_mosaic.version = 11 : i64} {
  func.func @ddc_kernel(%arg0: i32, %arg1: memref<8x16xbf16, #tpu.memory_space<vmem>>, %arg2: memref<16x128xbf16, #tpu.memory_space<vmem>>, %arg3: memref<1x128xf32, #tpu.memory_space<vmem>>, %arg4: memref<1x128xf32, #tpu.memory_space<vmem>>, %arg5: memref<1x128xf32, #tpu.memory_space<vmem>>, %arg6: memref<128x128xbf16, #tpu.memory_space<vmem>>, %arg7: memref<1x128xf32, #tpu.memory_space<vmem>>, %arg8: memref<8x128xf32, #tpu.memory_space<vmem>>, %arg9: memref<8x128xf32, #tpu.memory_space<vmem>>, %arg10: memref<8x128xf32, #tpu.memory_space<vmem>>) attributes {dimension_semantics = [#tpu.dimension_semantics<arbitrary>], iteration_bounds = array<i64: 1>, scalar_prefetch = 0 : i64, scratch_operands = 1 : i64, tpu.core_type = #tpu.core_type<tc>, window_params = [{pipeline_mode = #tpu.pipeline_mode<synchronous>, transform_indices = @transform_0, window_bounds = array<i64: 8, 16>}, {transform_indices = @transform_1, window_bounds = array<i64: 16, 128>}, {transform_indices = @transform_2, window_bounds = array<i64: 1, 128>}, {transform_indices = @transform_3, window_bounds = array<i64: 1, 128>}, {transform_indices = @transform_4, window_bounds = array<i64: 1, 128>}, {transform_indices = @transform_5, window_bounds = array<i64: 128, 128>}, {pipeline_mode = #tpu.pipeline_mode<synchronous>, transform_indices = @transform_6, window_bounds = array<i64: 1, 128>}, {pipeline_mode = #tpu.pipeline_mode<synchronous>, transform_indices = @transform_7, window_bounds = array<i64: 8, 128>}, {transform_indices = @transform_8, window_bounds = array<i64: 8, 128>}]} {
    %c0_i32 = arith.constant 0 : i32
    %0 = arith.cmpi eq, %arg0, %c0_i32 : i32
    %1 = arith.extui %0 : i1 to i32
    %c0_i32_0 = arith.constant 0 : i32
    %2 = arith.cmpi ne, %1, %c0_i32_0 : i32
    scf.if %2 {
      %cst_29 = arith.constant 0.000000e+00 : f32
      %46 = vector.broadcast %cst_29 : f32 to vector<8x128xf32>
      %c0_30 = arith.constant 0 : index
      %c0_31 = arith.constant 0 : index
      %47 = vector.load %arg10[%c0_30, %c0_31] : memref<8x128xf32, #tpu.memory_space<vmem>>, vector<8x128xf32>
      tpu.vector_store %arg10[%c0_30, %c0_31], %46 {strides = array<i32>} : memref<8x128xf32, #tpu.memory_space<vmem>>, vector<8x128xf32>,
    } else {
    }
    %c0 = arith.constant 0 : index
    %c0_1 = arith.constant 0 : index
    %3 = vector.load %arg1[%c0, %c0_1] : memref<8x16xbf16, #tpu.memory_space<vmem>>, vector<8x16xbf16>
    %c0_2 = arith.constant 0 : index
    %c0_3 = arith.constant 0 : index
    %4 = vector.load %arg2[%c0_2, %c0_3] : memref<16x128xbf16, #tpu.memory_space<vmem>>, vector<16x128xbf16>
    %cst = arith.constant dense<0.000000e+00> : vector<8x128xf32>
    %5 = tpu.matmul %3, %4, %cst {dimension_numbers = #tpu.dot_dimension_numbers<[1], [0], [0], [1], [0, 0, 1, 1], [], []>} : vector<8x16xbf16>, vector<16x128xbf16>, vector<8x128xf32> -> vector<8x128xf32>
    %c0_4 = arith.constant 0 : index
    %c0_5 = arith.constant 0 : index
    %6 = vector.load %arg3[%c0_4, %c0_5] : memref<1x128xf32, #tpu.memory_space<vmem>>, vector<1x128xf32>
    %7 = vector.broadcast %6 : vector<1x128xf32> to vector<8x128xf32>
    %8 = arith.addf %5, %7 : vector<8x128xf32>
    %cst_6 = arith.constant 0.000000e+00 : f32
    %9 = vector.broadcast %cst_6 : f32 to vector<8x128xf32>
    %10 = arith.maximumf %8, %9 : vector<8x128xf32>
    %cst_7 = arith.constant 1.000000e+00 : f32
    %11 = vector.broadcast %cst_7 : f32 to vector<1x8xf32>
    %cst_8 = arith.constant dense<0.000000e+00> : vector<1x128xf32>
    %12 = tpu.matmul %11, %10, %cst_8 {dimension_numbers = #tpu.dot_dimension_numbers<[1], [0], [0], [1], [0, 0, 1, 1], [], []>} : vector<1x8xf32>, vector<8x128xf32>, vector<1x128xf32> -> vector<1x128xf32>
    %13 = arith.mulf %10, %10 : vector<8x128xf32>
    %cst_9 = arith.constant dense<0.000000e+00> : vector<1x128xf32>
    %14 = tpu.matmul %11, %13, %cst_9 {dimension_numbers = #tpu.dot_dimension_numbers<[1], [0], [0], [1], [0, 0, 1, 1], [], []>} : vector<1x8xf32>, vector<8x128xf32>, vector<1x128xf32> -> vector<1x128xf32>
    %cst_10 = arith.constant 1.250000e-01 : f32
    %15 = vector.broadcast %cst_10 : f32 to vector<1x128xf32>
    %16 = arith.mulf %12, %15 : vector<1x128xf32>
    %cst_11 = arith.constant 1.250000e-01 : f32
    %17 = vector.broadcast %cst_11 : f32 to vector<1x128xf32>
    %18 = arith.mulf %14, %17 : vector<1x128xf32>
    %19 = arith.mulf %16, %16 : vector<1x128xf32>
    %20 = arith.subf %18, %19 : vector<1x128xf32>
    %cst_12 = arith.constant 0.000000e+00 : f32
    %21 = vector.broadcast %cst_12 : f32 to vector<1x128xf32>
    %22 = arith.maximumf %20, %21 : vector<1x128xf32>
    %23 = vector.broadcast %16 : vector<1x128xf32> to vector<8x128xf32>
    %24 = arith.subf %10, %23 : vector<8x128xf32>
    %cst_13 = arith.constant 9.99999974E-6 : f32
    %25 = vector.broadcast %cst_13 : f32 to vector<1x128xf32>
    %26 = arith.addf %22, %25 : vector<1x128xf32>
    %27 = math.rsqrt %26 : vector<1x128xf32>
    %28 = vector.broadcast %27 : vector<1x128xf32> to vector<8x128xf32>
    %29 = arith.mulf %24, %28 : vector<8x128xf32>
    %c0_14 = arith.constant 0 : index
    %c0_15 = arith.constant 0 : index
    %30 = vector.load %arg4[%c0_14, %c0_15] : memref<1x128xf32, #tpu.memory_space<vmem>>, vector<1x128xf32>
    %31 = vector.broadcast %30 : vector<1x128xf32> to vector<8x128xf32>
    %32 = arith.mulf %29, %31 : vector<8x128xf32>
    %c0_16 = arith.constant 0 : index
    %c0_17 = arith.constant 0 : index
    %33 = vector.load %arg5[%c0_16, %c0_17] : memref<1x128xf32, #tpu.memory_space<vmem>>, vector<1x128xf32>
    %34 = vector.broadcast %33 : vector<1x128xf32> to vector<8x128xf32>
    %35 = arith.addf %32, %34 : vector<8x128xf32>
    %c0_18 = arith.constant 0 : index
    %c0_19 = arith.constant 0 : index
    %36 = vector.load %arg9[%c0_18, %c0_19] : memref<8x128xf32, #tpu.memory_space<vmem>>, vector<8x128xf32>
    tpu.vector_store %arg9[%c0_18, %c0_19], %35 {strides = array<i32>} : memref<8x128xf32, #tpu.memory_space<vmem>>, vector<8x128xf32>,
    %c0_20 = arith.constant 0 : index
    %c0_21 = arith.constant 0 : index
    %37 = vector.load %arg10[%c0_20, %c0_21] : memref<8x128xf32, #tpu.memory_space<vmem>>, vector<8x128xf32>
    %38 = arith.truncf %35 : vector<8x128xf32> to vector<8x128xbf16>
    %c0_22 = arith.constant 0 : index
    %c0_23 = arith.constant 0 : index
    %39 = vector.load %arg6[%c0_22, %c0_23] : memref<128x128xbf16, #tpu.memory_space<vmem>>, vector<128x128xbf16>
    %cst_24 = arith.constant dense<0.000000e+00> : vector<8x128xf32>
    %40 = tpu.matmul %38, %39, %cst_24 {dimension_numbers = #tpu.dot_dimension_numbers<[1], [0], [0], [1], [0, 0, 1, 1], [], []>} : vector<8x128xbf16>, vector<128x128xbf16>, vector<8x128xf32> -> vector<8x128xf32>
    %41 = arith.addf %37, %40 : vector<8x128xf32>
    %c0_25 = arith.constant 0 : index
    %c0_26 = arith.constant 0 : index
    %42 = vector.load %arg10[%c0_25, %c0_26] : memref<8x128xf32, #tpu.memory_space<vmem>>, vector<8x128xf32>
    tpu.vector_store %arg10[%c0_25, %c0_26], %41 {strides = array<i32>} : memref<8x128xf32, #tpu.memory_space<vmem>>, vector<8x128xf32>,
    %c0_i32_27 = arith.constant 0 : i32
    %43 = arith.cmpi eq, %arg0, %c0_i32_27 : i32
    %44 = arith.extui %43 : i1 to i32
    %c0_i32_28 = arith.constant 0 : i32
    %45 = arith.cmpi ne, %44, %c0_i32_28 : i32
    scf.if %45 {
      %c0_29 = arith.constant 0 : index
      %c0_30 = arith.constant 0 : index
      %46 = vector.load %arg10[%c0_29, %c0_30] : memref<8x128xf32, #tpu.memory_space<vmem>>, vector<8x128xf32>
      %c0_31 = arith.constant 0 : index
      %c0_32 = arith.constant 0 : index
      %47 = vector.load %arg7[%c0_31, %c0_32] : memref<1x128xf32, #tpu.memory_space<vmem>>, vector<1x128xf32>
      %48 = vector.broadcast %47 : vector<1x128xf32> to vector<8x128xf32>
      %49 = arith.addf %46, %48 : vector<8x128xf32>
      %cst_33 = arith.constant dense<0xFF800000> : vector<8xf32>
      %50 = vector.multi_reduction <maximumf>, %49, %cst_33 [1] : vector<8x128xf32> to vector<8xf32>
      %51 = vector.shape_cast %50 : vector<8xf32> to vector<8x1xf32>
      %52 = vector.broadcast %51 : vector<8x1xf32> to vector<8x128xf32>
      %53 = arith.subf %49, %52 : vector<8x128xf32>
      %54 = math.exp %53 : vector<8x128xf32>
      %cst_34 = arith.constant dense<0.000000e+00> : vector<8xf32>
      %55 = vector.multi_reduction <add>, %54, %cst_34 [1] : vector<8x128xf32> to vector<8xf32>
      %56 = vector.shape_cast %55 : vector<8xf32> to vector<8x1xf32>
      %57 = tpu.reciprocal %56 {approx = true} : vector<8x1xf32> -> vector<8x1xf32>
      %58 = vector.broadcast %57 : vector<8x1xf32> to vector<8x128xf32>
      %59 = arith.mulf %54, %58 : vector<8x128xf32>
      %c0_35 = arith.constant 0 : index
      %c0_36 = arith.constant 0 : index
      %60 = vector.load %arg8[%c0_35, %c0_36] : memref<8x128xf32, #tpu.memory_space<vmem>>, vector<8x128xf32>
      tpu.vector_store %arg8[%c0_35, %c0_36], %59 {strides = array<i32>} : memref<8x128xf32, #tpu.memory_space<vmem>>, vector<8x128xf32>,
    } else {
    }
    return
  }
  func.func @transform_0(%arg0: i32) -> (i32, i32) {
    %c0_i32 = arith.constant 0 : i32
    %c0_i32_0 = arith.constant 0 : i32
    %c0_i32_1 = arith.constant 0 : i32
    return %c0_i32, %c0_i32_0 : i32, i32
  }
  func.func @transform_1(%arg0: i32) -> (i32, i32) {
    %c0_i32 = arith.constant 0 : i32
    %c0_i32_0 = arith.constant 0 : i32
    return %c0_i32, %arg0 : i32, i32
  }
  func.func @transform_2(%arg0: i32) -> (i32, i32) {
    %c0_i32 = arith.constant 0 : i32
    %c0_i32_0 = arith.constant 0 : i32
    return %c0_i32, %arg0 : i32, i32
  }
  func.func @transform_3(%arg0: i32) -> (i32, i32) {
    %c0_i32 = arith.constant 0 : i32
    %c0_i32_0 = arith.constant 0 : i32
    return %c0_i32, %arg0 : i32, i32
  }
  func.func @transform_4(%arg0: i32) -> (i32, i32) {
    %c0_i32 = arith.constant 0 : i32
    %c0_i32_0 = arith.constant 0 : i32
    return %c0_i32, %arg0 : i32, i32
  }
  func.func @transform_5(%arg0: i32) -> (i32, i32) {
    %c0_i32 = arith.constant 0 : i32
    %c0_i32_0 = arith.constant 0 : i32
    return %arg0, %c0_i32 : i32, i32
  }
  func.func @transform_6(%arg0: i32) -> (i32, i32) {
    %c0_i32 = arith.constant 0 : i32
    %c0_i32_0 = arith.constant 0 : i32
    %c0_i32_1 = arith.constant 0 : i32
    return %c0_i32, %c0_i32_0 : i32, i32
  }
  func.func @transform_7(%arg0: i32) -> (i32, i32) {
    %c0_i32 = arith.constant 0 : i32
    %c0_i32_0 = arith.constant 0 : i32
    %c0_i32_1 = arith.constant 0 : i32
    return %c0_i32, %c0_i32_0 : i32, i32
  }
  func.func @transform_8(%arg0: i32) -> (i32, i32) {
    %c0_i32 = arith.constant 0 : i32
    %c0_i32_0 = arith.constant 0 : i32
    return %c0_i32, %arg0 : i32, i32
  }
}

module attributes {stable_mosaic.version = 11 : i64} {
  func.func @ddc_kernel(%arg0: i32, %arg1: memref<8x16xbf16, #tpu.memory_space<vmem>>, %arg2: memref<16x128xbf16, #tpu.memory_space<vmem>>, %arg3: memref<1x128xf32, #tpu.memory_space<vmem>>, %arg4: memref<1x128xf32, #tpu.memory_space<vmem>>, %arg5: memref<1x128xf32, #tpu.memory_space<vmem>>, %arg6: memref<128x128xbf16, #tpu.memory_space<vmem>>, %arg7: memref<1x128xf32, #tpu.memory_space<vmem>>, %arg8: memref<8x128xf32, #tpu.memory_space<vmem>>, %arg9: memref<8x128xf32, #tpu.memory_space<vmem>>, %arg10: memref<8x128xf32, #tpu.memory_space<vmem>>) attributes {dimension_semantics = [#tpu.dimension_semantics<arbitrary>], iteration_bounds = array<i64: 1>, scalar_prefetch = 0 : i64, scratch_operands = 1 : i64, tpu.core_type = #tpu.core_type<tc>, window_params = [{pipeline_mode = #tpu.pipeline_mode<synchronous>, transform_indices = @transform_0, window_bounds = array<i64: 8, 16>}, {transform_indices = @transform_1, window_bounds = array<i64: 16, 128>}, {transform_indices = @transform_2, window_bounds = array<i64: 1, 128>}, {transform_indices = @transform_3, window_bounds = array<i64: 1, 128>}, {transform_indices = @transform_4, window_bounds = array<i64: 1, 128>}, {transform_indices = @transform_5, window_bounds = array<i64: 128, 128>}, {pipeline_mode = #tpu.pipeline_mode<synchronous>, transform_indices = @transform_6, window_bounds = array<i64: 1, 128>}, {pipeline_mode = #tpu.pipeline_mode<synchronous>, transform_indices = @transform_7, window_bounds = array<i64: 8, 128>}, {transform_indices = @transform_8, window_bounds = array<i64: 8, 128>}]} {
    %c0_i32 = arith.constant 0 : i32
    %0 = arith.cmpi eq, %arg0, %c0_i32 : i32
    %1 = arith.extui %0 : i1 to i32
    %c0_i32_0 = arith.constant 0 : i32
    %2 = arith.cmpi ne, %1, %c0_i32_0 : i32
    scf.if %2 {
      %cst_29 = arith.constant 0.000000e+00 : f32
      %46 = vector.broadcast %cst_29 : f32 to vector<8x128xf32>
      %c0_30 = arith.constant 0 : index
      %c0_31 = arith.constant 0 : index
      %47 = vector.load %arg10[%c0_30, %c0_31] : memref<8x128xf32, #tpu.memory_space<vmem>>, vector<8x128xf32>
      tpu.vector_store %arg10[%c0_30, %c0_31], %46 {strides = array<i32>} : memref<8x128xf32, #tpu.memory_space<vmem>>, vector<8x128xf32>,
    } else {
    }
    %c0 = arith.constant 0 : index
    %c0_1 = arith.constant 0 : index
    %3 = vector.load %arg1[%c0, %c0_1] : memref<8x16xbf16, #tpu.memory_space<vmem>>, vector<8x16xbf16>
    %c0_2 = arith.constant 0 : index
    %c0_3 = arith.constant 0 : index
    %4 = vector.load %arg2[%c0_2, %c0_3] : memref<16x128xbf16, #tpu.memory_space<vmem>>, vector<16x128xbf16>
    %cst = arith.constant dense<0.000000e+00> : vector<8x128xf32>
    %5 = tpu.matmul %3, %4, %cst {dimension_numbers = #tpu.dot_dimension_numbers<[1], [0], [0], [1], [0, 0, 1, 1], [], []>} : vector<8x16xbf16>, vector<16x128xbf16>, vector<8x128xf32> -> vector<8x128xf32>
    %c0_4 = arith.constant 0 : index
    %c0_5 = arith.constant 0 : index
    %6 = vector.load %arg3[%c0_4, %c0_5] : memref<1x128xf32, #tpu.memory_space<vmem>>, vector<1x128xf32>
    %7 = vector.broadcast %6 : vector<1x128xf32> to vector<8x128xf32>
    %8 = arith.addf %5, %7 : vector<8x128xf32>
    %cst_6 = arith.constant 0.000000e+00 : f32
    %9 = vector.broadcast %cst_6 : f32 to vector<8x128xf32>
    %10 = arith.maximumf %8, %9 : vector<8x128xf32>
    %cst_7 = arith.constant 1.000000e+00 : f32
    %11 = vector.broadcast %cst_7 : f32 to vector<1x8xf32>
    %cst_8 = arith.constant dense<0.000000e+00> : vector<1x128xf32>
    %12 = tpu.matmul %11, %10, %cst_8 {dimension_numbers = #tpu.dot_dimension_numbers<[1], [0], [0], [1], [0, 0, 1, 1], [], []>} : vector<1x8xf32>, vector<8x128xf32>, vector<1x128xf32> -> vector<1x128xf32>
    %13 = arith.mulf %10, %10 : vector<8x128xf32>
    %cst_9 = arith.constant dense<0.000000e+00> : vector<1x128xf32>
    %14 = tpu.matmul %11, %13, %cst_9 {dimension_numbers = #tpu.dot_dimension_numbers<[1], [0], [0], [1], [0, 0, 1, 1], [], []>} : vector<1x8xf32>, vector<8x128xf32>, vector<1x128xf32> -> vector<1x128xf32>
    %cst_10 = arith.constant 1.250000e-01 : f32
    %15 = vector.broadcast %cst_10 : f32 to vector<1x128xf32>
    %16 = arith.mulf %12, %15 : vector<1x128xf32>
    %cst_11 = arith.constant 1.250000e-01 : f32
    %17 = vector.broadcast %cst_11 : f32 to vector<1x128xf32>
    %18 = arith.mulf %14, %17 : vector<1x128xf32>
    %19 = arith.mulf %16, %16 : vector<1x128xf32>
    %20 = arith.subf %18, %19 : vector<1x128xf32>
    %cst_12 = arith.constant 0.000000e+00 : f32
    %21 = vector.broadcast %cst_12 : f32 to vector<1x128xf32>
    %22 = arith.maximumf %20, %21 : vector<1x128xf32>
    %23 = vector.broadcast %16 : vector<1x128xf32> to vector<8x128xf32>
    %24 = arith.subf %10, %23 : vector<8x128xf32>
    %cst_13 = arith.constant 9.99999974E-6 : f32
    %25 = vector.broadcast %cst_13 : f32 to vector<1x128xf32>
    %26 = arith.addf %22, %25 : vector<1x128xf32>
    %27 = math.rsqrt %26 : vector<1x128xf32>
    %28 = vector.broadcast %27 : vector<1x128xf32> to vector<8x128xf32>
    %29 = arith.mulf %24, %28 : vector<8x128xf32>
    %c0_14 = arith.constant 0 : index
    %c0_15 = arith.constant 0 : index
    %30 = vector.load %arg4[%c0_14, %c0_15] : memref<1x128xf32, #tpu.memory_space<vmem>>, vector<1x128xf32>
    %31 = vector.broadcast %30 : vector<1x128xf32> to vector<8x128xf32>
    %32 = arith.mulf %29, %31 : vector<8x128xf32>
    %c0_16 = arith.constant 0 : index
    %c0_17 = arith.constant 0 : index
    %33 = vector.load %arg5[%c0_16, %c0_17] : memref<1x128xf32, #tpu.memory_space<vmem>>, vector<1x128xf32>
    %34 = vector.broadcast %33 : vector<1x128xf32> to vector<8x128xf32>
    %35 = arith.addf %32, %34 : vector<8x128xf32>
    %c0_18 = arith.constant 0 : index
    %c0_19 = arith.constant 0 : index
    %36 = vector.load %arg9[%c0_18, %c0_19] : memref<8x128xf32, #tpu.memory_space<vmem>>, vector<8x128xf32>
    tpu.vector_store %arg9[%c0_18, %c0_19], %35 {strides = array<i32>} : memref<8x128xf32, #tpu.memory_space<vmem>>, vector<8x128xf32>,
    %c0_20 = arith.constant 0 : index
    %c0_21 = arith.constant 0 : index
    %37 = vector.load %arg10[%c0_20, %c0_21] : memref<8x128xf32, #tpu.memory_space<vmem>>, vector<8x128xf32>
    %38 = arith.truncf %35 : vector<8x128xf32> to vector<8x128xbf16>
    %c0_22 = arith.constant 0 : index
    %c0_23 = arith.constant 0 : index
    %39 = vector.load %arg6[%c0_22, %c0_23] : memref<128x128xbf16, #tpu.memory_space<vmem>>, vector<128x128xbf16>
    %cst_24 = arith.constant dense<0.000000e+00> : vector<8x128xf32>
    %40 = tpu.matmul %38, %39, %cst_24 {dimension_numbers = #tpu.dot_dimension_numbers<[1], [0], [0], [1], [0, 0, 1, 1], [], []>} : vector<8x128xbf16>, vector<128x128xbf16>, vector<8x128xf32> -> vector<8x128xf32>
    %41 = arith.addf %37, %40 : vector<8x128xf32>
    %c0_25 = arith.constant 0 : index
    %c0_26 = arith.constant 0 : index
    %42 = vector.load %arg10[%c0_25, %c0_26] : memref<8x128xf32, #tpu.memory_space<vmem>>, vector<8x128xf32>
    tpu.vector_store %arg10[%c0_25, %c0_26], %41 {strides = array<i32>} : memref<8x128xf32, #tpu.memory_space<vmem>>, vector<8x128xf32>,
    %c0_i32_27 = arith.constant 0 : i32
    %43 = arith.cmpi eq, %arg0, %c0_i32_27 : i32
    %44 = arith.extui %43 : i1 to i32
    %c0_i32_28 = arith.constant 0 : i32
    %45 = arith.cmpi ne, %44, %c0_i32_28 : i32
    scf.if %45 {
      %c0_29 = arith.constant 0 : index
      %c0_30 = arith.constant 0 : index
      %46 = vector.load %arg10[%c0_29, %c0_30] : memref<8x128xf32, #tpu.memory_space<vmem>>, vector<8x128xf32>
      %c0_31 = arith.constant 0 : index
      %c0_32 = arith.constant 0 : index
      %47 = vector.load %arg7[%c0_31, %c0_32] : memref<1x128xf32, #tpu.memory_space<vmem>>, vector<1x128xf32>
      %48 = vector.broadcast %47 : vector<1x128xf32> to vector<8x128xf32>
      %49 = arith.addf %46, %48 : vector<8x128xf32>
      %cst_33 = arith.constant dense<0xFF800000> : vector<8xf32>
      %50 = vector.multi_reduction <maximumf>, %49, %cst_33 [1] : vector<8x128xf32> to vector<8xf32>
      %51 = vector.shape_cast %50 : vector<8xf32> to vector<8x1xf32>
      %52 = vector.broadcast %51 : vector<8x1xf32> to vector<8x128xf32>
      %53 = arith.subf %49, %52 : vector<8x128xf32>
      %54 = math.exp %53 : vector<8x128xf32>
      %cst_34 = arith.constant dense<0.000000e+00> : vector<8xf32>
      %55 = vector.multi_reduction <add>, %54, %cst_34 [1] : vector<8x128xf32> to vector<8xf32>
      %56 = vector.shape_cast %55 : vector<8xf32> to vector<8x1xf32>
      %57 = tpu.reciprocal %56 {approx = true} : vector<8x1xf32> -> vector<8x1xf32>
      %58 = vector.broadcast %57 : vector<8x1xf32> to vector<8x128xf32>
      %59 = arith.mulf %54, %58 : vector<8x128xf32>
      %c0_35 = arith.constant 0 : index
      %c0_36 = arith.constant 0 : index
      %60 = vector.load %arg8[%c0_35, %c0_36] : memref<8x128xf32, #tpu.memory_space<vmem>>, vector<8x128xf32>
      tpu.vector_store %arg8[%c0_35, %c0_36], %59 {strides = array<i32>} : memref<8x128xf32, #tpu.memory_space<vmem>>, vector<8x128xf32>,
    } else {
    }
    return
  }
  func.func @transform_0(%arg0: i32) -> (i32, i32) {
    %c0_i32 = arith.constant 0 : i32
    %c0_i32_0 = arith.constant 0 : i32
    %c0_i32_1 = arith.constant 0 : i32
    return %c0_i32, %c0_i32_0 : i32, i32
  }
  func.func @transform_1(%arg0: i32) -> (i32, i32) {
    %c0_i32 = arith.constant 0 : i32
    %c0_i32_0 = arith.constant 0 : i32
    return %c0_i32, %arg0 : i32, i32
  }
  func.func @transform_2(%arg0: i32) -> (i32, i32) {
    %c0_i32 = arith.constant 0 : i32
    %c0_i32_0 = arith.constant 0 : i32
    return %c0_i32, %arg0 : i32, i32
  }
  func.func @transform_3(%arg0: i32) -> (i32, i32) {
    %c0_i32 = arith.constant 0 : i32
    %c0_i32_0 = arith.constant 0 : i32
    return %c0_i32, %arg0 : i32, i32
  }
  func.func @transform_4(%arg0: i32) -> (i32, i32) {
    %c0_i32 = arith.constant 0 : i32
    %c0_i32_0 = arith.constant 0 : i32
    return %c0_i32, %arg0 : i32, i32
  }
  func.func @transform_5(%arg0: i32) -> (i32, i32) {
    %c0_i32 = arith.constant 0 : i32
    %c0_i32_0 = arith.constant 0 : i32
    return %arg0, %c0_i32 : i32, i32
  }
  func.func @transform_6(%arg0: i32) -> (i32, i32) {
    %c0_i32 = arith.constant 0 : i32
    %c0_i32_0 = arith.constant 0 : i32
    %c0_i32_1 = arith.constant 0 : i32
    return %c0_i32, %c0_i32_0 : i32, i32
  }
  func.func @transform_7(%arg0: i32) -> (i32, i32) {
    %c0_i32 = arith.constant 0 : i32
    %c0_i32_0 = arith.constant 0 : i32
    %c0_i32_1 = arith.constant 0 : i32
    return %c0_i32, %c0_i32_0 : i32, i32
  }
  func.func @transform_8(%arg0: i32) -> (i32, i32) {
    %c0_i32 = arith.constant 0 : i32
    %c0_i32_0 = arith.constant 0 : i32
    return %c0_i32, %arg0 : i32, i32
  }
}

</mosaic_0001>

<llo_original>
// kernel: tpu_custom_call.1
$region0: #{tpu_custom_call.1}
  #allocation0 [shape = 'u32[]', space=smem, size = 0x4, offset = 0x4, fixed_abs, tag = 'smem constant byte address 0x4 - core index']
  #allocation1 [shape = 'u32[72,128]{1,0:T(1,128)}', space=vmem, size = 0x9000, scoped, tag = 'internal scratch']
  #allocation2 [shape = 'f32[8,128]{1,0:T(8,128)}', space=vmem, size = 0x1000, scoped, tag = 'scratch operand']
  %s0 = inlined_call_operand.hbm [shape: bf16[8,16], index: 0, kind: input, shape index: {}]
  %s1 = inlined_call_operand.hbm [shape: bf16[16,128], index: 1, kind: input, shape index: {}]
  %s2 = inlined_call_operand.vmem [shape: f32[1,128], index: 2, kind: input, shape index: {}]
  %s3 = inlined_call_operand.vmem [shape: f32[1,128], index: 3, kind: input, shape index: {}]
  %s4 = inlined_call_operand.vmem [shape: f32[1,128], index: 4, kind: input, shape index: {}]
  %s5 = inlined_call_operand.hbm [shape: bf16[128,128], index: 5, kind: input, shape index: {}]
  %s6 = inlined_call_operand.vmem [shape: f32[1,128], index: 6, kind: input, shape index: {}]
  %s7 = inlined_call_operand.hbm [shape: f32[8,128], index: 7, kind: output, shape index: {0}]
  %s8 = inlined_call_operand.hbm [shape: f32[8,128], index: 8, kind: output, shape index: {1}]
  %9 = xla_tuple %s7, %s8
  %s10 = sld [smem:[#allocation0]]
  $region66: #{tpu_custom_call.1} parent=0
    _
  %s12 = ssub.s32 1, %s10
  %s13 = scalar_select 0, %s12, %s10
  $region1: #{tpu_custom_call.1} parent=0
    #allocation3 [shape = 'u8[2048]{0}', space=vmem, size = 0x800, scoped, tag = 'input window, operand 0, single buffered']
    #allocation4 [shape = 's32[1]{0}', space=sflag, size = 0x4, scoped, tag = 'scoped memory for tpu_custom_call.1']
    #allocation5 [shape = 's32[1]{0}', space=sflag, size = 0x4, scoped, tag = 'scoped memory for tpu_custom_call.1']
    #allocation6 [shape = 'u8[4096]{0}', space=vmem, size = 0x1000, scoped, tag = 'input window, operand 1, single buffered']
    #allocation7 [shape = 's32[1]{0}', space=sflag, size = 0x4, scoped, tag = 'scoped memory for tpu_custom_call.1']
    #allocation8 [shape = 'u8[32768]{0}', space=vmem, size = 0x8000, scoped, tag = 'input window, operand 5, single buffered']
    #allocation9 [shape = 'u8[4096]{0}', space=vmem, size = 0x1000, scoped, tag = 'output window, operand 0, single buffered']
    #allocation10 [shape = 'u8[4096]{0}', space=vmem, size = 0x1000, scoped, tag = 'output window, operand 1, single buffered']
    #allocation11 [shape = 's32[1]{0}', space=sflag, size = 0x4, scoped, tag = 'scoped memory for tpu_custom_call.1']
    %14 = vsyncpa [#allocation4], 0
    %15 = vsyncpa [#allocation7], 0
    %16 = vsyncpa [#allocation5], 0
    %17 = vsyncpa [#allocation11], 0
    // Predicated region
    $region2: #{tpu_custom_call.1} parent=1 // pred_check
      _
    $region3: #{tpu_custom_call.1} parent=1 // pred_check_branch
      %19 = sbr.rel (0) target = $region5
    $region4: #{tpu_custom_call.1} parent=1 // pred_region
      %21 = vsyncadd [#allocation4], 0
      %s23 = sshll.u32 %s0, 4
      %s24 = int_to_ptr.hbm [resolvable:$true] %s23
      %s25 = sshll.u32 [#allocation3], 4
      %s26 = int_to_ptr.vmem [resolvable:$true] %s25
      %28 = dma.hbm_to_vmem [thread:$0]  %s24, 64, %s26, [#allocation4]
    $region5: #{tpu_custom_call.1} parent=1 // pred_fallthru
      _
    // Predicated region
    $region6: #{tpu_custom_call.1} parent=1 // pred_check
      _
    $region7: #{tpu_custom_call.1} parent=1 // pred_check_branch
      %30 = sbr.rel (0) target = $region9
    $region8: #{tpu_custom_call.1} parent=1 // pred_region
      %32 = vsyncadd [#allocation7], 0
      %s33 = sshll.u32 %s1, 4
      %s34 = int_to_ptr.hbm [resolvable:$true] %s33
      %s35 = sshll.u32 [#allocation6], 4
      %s36 = int_to_ptr.vmem [resolvable:$true] %s35
      %41 = dma.hbm_to_vmem [thread:$0]  %s34, 128, %s36, [#allocation7], 64, 64, 4
    $region9: #{tpu_custom_call.1} parent=1 // pred_fallthru
      _
    // Predicated region
    $region10: #{tpu_custom_call.1} parent=1 // pred_check
      _
    $region11: #{tpu_custom_call.1} parent=1 // pred_check_branch
      %43 = sbr.rel (0) target = $region13
    $region12: #{tpu_custom_call.1} parent=1 // pred_region
      _
    $region13: #{tpu_custom_call.1} parent=1 // pred_fallthru
      _
    // Predicated region
    $region14: #{tpu_custom_call.1} parent=1 // pred_check
      _
    $region15: #{tpu_custom_call.1} parent=1 // pred_check_branch
      %45 = sbr.rel (0) target = $region17
    $region16: #{tpu_custom_call.1} parent=1 // pred_region
      _
    $region17: #{tpu_custom_call.1} parent=1 // pred_fallthru
      _
    // Predicated region
    $region18: #{tpu_custom_call.1} parent=1 // pred_check
      _
    $region19: #{tpu_custom_call.1} parent=1 // pred_check_branch
      %47 = sbr.rel (0) target = $region21
    $region20: #{tpu_custom_call.1} parent=1 // pred_region
      _
    $region21: #{tpu_custom_call.1} parent=1 // pred_fallthru
      _
    // Predicated region
    $region22: #{tpu_custom_call.1} parent=1 // pred_check
      _
    $region23: #{tpu_custom_call.1} parent=1 // pred_check_branch
      %49 = sbr.rel (0) target = $region25
    $region24: #{tpu_custom_call.1} parent=1 // pred_region
      %51 = vsyncadd [#allocation7], 0
      %s52 = sshll.u32 %s5, 4
      %s53 = int_to_ptr.hbm [resolvable:$true] %s52
      %s54 = sshll.u32 [#allocation8], 4
      %s55 = int_to_ptr.vmem [resolvable:$true] %s54
      %60 = dma.hbm_to_vmem [thread:$0]  %s53, 1024, %s55, [#allocation7], 64, 64, 4
    $region25: #{tpu_custom_call.1} parent=1 // pred_fallthru
      _
    // Predicated region
    $region26: #{tpu_custom_call.1} parent=1 // pred_check
      _
    $region27: #{tpu_custom_call.1} parent=1 // pred_check_branch
      %62 = sbr.rel (0) target = $region29
    $region28: #{tpu_custom_call.1} parent=1 // pred_region
      _
    $region29: #{tpu_custom_call.1} parent=1 // pred_fallthru
      _
    // Predicated region
    $region30: #{tpu_custom_call.1} parent=1 // pred_check
      _
    $region31: #{tpu_custom_call.1} parent=1 // pred_check_branch
      %64 = sbr.rel (0) target = $region33
    $region32: #{tpu_custom_call.1} parent=1 // pred_region
      %66 = dma.done [#allocation4], 64
    $region33: #{tpu_custom_call.1} parent=1 // pred_fallthru
      _
    // Predicated region
    $region34: #{tpu_custom_call.1} parent=1 // pred_check
      _
    $region35: #{tpu_custom_call.1} parent=1 // pred_check_branch
      %68 = sbr.rel (0) target = $region37
    $region36: #{tpu_custom_call.1} parent=1 // pred_region
      %70 = dma.done [#allocation7], 128
    $region37: #{tpu_custom_call.1} parent=1 // pred_fallthru
      _
    // Predicated region
    $region38: #{tpu_custom_call.1} parent=1 // pred_check
      _
    $region39: #{tpu_custom_call.1} parent=1 // pred_check_branch
      %72 = sbr.rel (0) target = $region41
    $region40: #{tpu_custom_call.1} parent=1 // pred_region
      %74 = dma.done [#allocation7], 1024
    $region41: #{tpu_custom_call.1} parent=1 // pred_fallthru
      _
    %p76 = scmp.eq.s32.totalorder 0, 0
    // Predicated region
    $region42: #{tpu_custom_call.1} parent=1 // pred_check
      %p77 = pneg %p76
    $region43: #{tpu_custom_call.1} parent=1 // pred_check_branch
      %79 = sbr.rel (%p77) target = $region45
    $region44: #{tpu_custom_call.1} parent=1 // pred_region
      %80 = vst [vmem:[#allocation2] sm:$0xff] 0.0
    $region45: #{tpu_custom_call.1} parent=1 // pred_fallthru
      _
    %v81 = vld [vmem:[#allocation3] sm:$0xf]
    %v82 = vld [vmem:[#allocation6] sm:$0xf]
    %v83 = vld [vmem:[#allocation6 + $0x4] sm:$0xf]
    %v84 = vld [vmem:[%s2] sm:$0x1]
    %v86 = vperm.slane %v84, 0
    %v90 = vunpack.c.l.b16 %v82
    %v91 = vunpack.c.l.b16 %v83
    %v92 = vpack.c.b16 %v91, %v90
    %vm94 = vcmask 130048
    %v96 = vsel %vm94, %v81, 0
    %98 = vmatpush.bf16.msra.mxu0 0
    %99 = vmatpush.bf16.msra.mxu0 0
    %100 = vmatpush.bf16.msra.mxu0 0
    %101 = vmatpush.bf16.msra.mxu0 0
    %102 = vmatpush.bf16.msra.mxu0 0
    %103 = vmatpush.bf16.msra.mxu0 0
    %104 = vmatpush.bf16.msra.mxu0 0
    %105 = vmatpush.bf16.msra.mxu0 %v92
    %106 = vmatmul.bf16.gmra.mxu0 %v96
    %v107 = vpop.f32.mrf.mxu0
    %v108 = vadd.f32 %v86, %v107
    %v109 = vpop.f32.mrf.mxu0
    %110 = vdwg.mxu0
    %v111 = vmax.f32 %v108, 0.0
    %vm112 = vcmask 64512
    %v114 = vsel %vm112, 1.0, 0
    %116 = vmatpush.msra.mxu0 0.0
    %117 = vmatpush.msra.mxu0 0.0
    %118 = vmatpush.msra.mxu0 0.0
    %119 = vmatpush.msra.mxu0 0.0
    %120 = vmatpush.msra.mxu0 0.0
    %121 = vmatpush.msra.mxu0 0.0
    %122 = vmatpush.msra.mxu0 0.0
    %123 = vmatpush.msra.mxu0 0.0
    %124 = vmatpush.msra.mxu0 0.0
    %125 = vmatpush.msra.mxu0 0.0
    %126 = vmatpush.msra.mxu0 0.0
    %127 = vmatpush.msra.mxu0 0.0
    %128 = vmatpush.msra.mxu0 0.0
    %129 = vmatpush.msra.mxu0 0.0
    %130 = vmatpush.msra.mxu0 0.0
    %131 = vmatpush.msra.mxu0 %v111
    %132 = vmatmul.f32.gmra.mxu0 %v114
    %v133 = vpop.f32.mrf.mxu0
    %v134 = vadd.f32 0.0, %v133
    %135 = vdwg.mxu0
    %v136 = vmul.f32 %v111, %v111
    %137 = vmatpush.msra.mxu0 0.0
    %138 = vmatpush.msra.mxu0 0.0
    %139 = vmatpush.msra.mxu0 0.0
    %140 = vmatpush.msra.mxu0 0.0
    %141 = vmatpush.msra.mxu0 0.0
    %142 = vmatpush.msra.mxu0 0.0
    %143 = vmatpush.msra.mxu0 0.0
    %144 = vmatpush.msra.mxu0 0.0
    %145 = vmatpush.msra.mxu0 0.0
    %146 = vmatpush.msra.mxu0 0.0
    %147 = vmatpush.msra.mxu0 0.0
    %148 = vmatpush.msra.mxu0 0.0
    %149 = vmatpush.msra.mxu0 0.0
    %150 = vmatpush.msra.mxu0 0.0
    %151 = vmatpush.msra.mxu0 0.0
    %152 = vmatpush.msra.mxu0 %v136
    %153 = vmatmul.f32.gmra.mxu0 %v114
    %v154 = vpop.f32.mrf.mxu0
    %v155 = vadd.f32 0.0, %v154
    %156 = vdwg.mxu0
    %v157 = vmul.f32 %v134, 0.125
    %v158 = vmul.f32 %v155, 0.125
    %v159 = vmul.f32 %v157, %v157
    %v160 = vsub.f32 %v158, %v159
    %v161 = vmax.f32 %v160, 0.0
    %v162 = vperm.slane %v157, 0
    %v163 = vsub.f32 %v111, %v162
    %v164 = vadd.f32 %v161, 1e-05
    %v165 = vrsqrt.pop %v164
    %v166 = vmul.f32 %v165, %v164
    %v167 = vmul.f32 %v166, %v165
    %v168 = vmul.f32 0.5, %v167
    %v169 = vsub.f32 1.5, %v168
    %v170 = vmul.f32 %v165, %v169
    %vm171 = vweird.f32 %v164
    %vm172 = vweird.f32 %v165
    %vm173 = vmor %vm171, %vm172
    %v174 = vsel %vm173, %v165, %v170
    %v175 = vperm.slane %v174, 0
    %v176 = vmul.f32 %v163, %v175
    %v177 = vld [vmem:[%s3] sm:$0x1]
    %v179 = vperm.slane %v177, 0
    %v181 = vmul.f32 %v176, %v179
    %v182 = vld [vmem:[%s4] sm:$0x1]
    %v184 = vperm.slane %v182, 0
    %v186 = vadd.f32 %v181, %v184
    %187 = vst [vmem:[#allocation10] sm:$0xff] %v186
    %v188 = vld [vmem:[#allocation2] sm:$0xff]
    %v189 = vpack.c.bf16 %v186, %v186
    %v190 = vld [vmem:[#allocation8] sm:$0xf]
    %v191 = vld [vmem:[#allocation8 + $0x4] sm:$0xf]
    %v192 = vld [vmem:[#allocation8 + $0x8] sm:$0xf]
    %v193 = vld [vmem:[#allocation8 + $0xc] sm:$0xf]
    %v194 = vld [vmem:[#allocation8 + $0x10] sm:$0xf]
    %v195 = vld [vmem:[#allocation8 + $0x14] sm:$0xf]
    %v196 = vld [vmem:[#allocation8 + $0x18] sm:$0xf]
    %v197 = vld [vmem:[#allocation8 + $0x1c] sm:$0xf]
    %v198 = vld [vmem:[#allocation8 + $0x20] sm:$0xf]
    %v199 = vld [vmem:[#allocation8 + $0x24] sm:$0xf]
    %v200 = vld [vmem:[#allocation8 + $0x28] sm:$0xf]
    %v201 = vld [vmem:[#allocation8 + $0x2c] sm:$0xf]
    %v202 = vld [vmem:[#allocation8 + $0x30] sm:$0xf]
    %v203 = vld [vmem:[#allocation8 + $0x34] sm:$0xf]
    %v204 = vld [vmem:[#allocation8 + $0x38] sm:$0xf]
    %v205 = vld [vmem:[#allocation8 + $0x3c] sm:$0xf]
    %v222 = vunpack.c.l.b16 %v190
    %v223 = vunpack.c.l.b16 %v191
    %v224 = vunpack.c.l.b16 %v192
    %v225 = vunpack.c.l.b16 %v193
    %v226 = vunpack.c.l.b16 %v194
    %v227 = vunpack.c.l.b16 %v195
    %v228 = vunpack.c.l.b16 %v196
    %v229 = vunpack.c.l.b16 %v197
    %v230 = vunpack.c.l.b16 %v198
    %v231 = vunpack.c.l.b16 %v199
    %v232 = vunpack.c.l.b16 %v200
    %v233 = vunpack.c.l.b16 %v201
    %v234 = vunpack.c.l.b16 %v202
    %v235 = vunpack.c.l.b16 %v203
    %v236 = vunpack.c.l.b16 %v204
    %v237 = vunpack.c.l.b16 %v205
    %v238 = vpack.c.b16 %v223, %v222
    %v239 = vpack.c.b16 %v225, %v224
    %v240 = vpack.c.b16 %v227, %v226
    %v241 = vpack.c.b16 %v229, %v228
    %v242 = vpack.c.b16 %v231, %v230
    %v243 = vpack.c.b16 %v233, %v232
    %v244 = vpack.c.b16 %v235, %v234
    %v245 = vpack.c.b16 %v237, %v236
    %254 = vmatpush.bf16.msra.mxu0 %v245
    %255 = vmatpush.bf16.msra.mxu0 %v244
    %256 = vmatpush.bf16.msra.mxu0 %v243
    %257 = vmatpush.bf16.msra.mxu0 %v242
    %258 = vmatpush.bf16.msra.mxu0 %v241
    %259 = vmatpush.bf16.msra.mxu0 %v240
    %260 = vmatpush.bf16.msra.mxu0 %v239
    %261 = vmatpush.bf16.msra.mxu0 %v238
    %262 = vmatmul.bf16.gmra.mxu0 %v189
    %v263 = vpop.f32.mrf.mxu0
    %v264 = vadd.f32 0.0, %v263
    %v265 = vpop.f32.mrf.mxu0
    %266 = vdwg.mxu0
    %v267 = vadd.f32 %v188, %v264
    %268 = vst [vmem:[#allocation2] sm:$0xff] %v267
    // Predicated region
    $region46: #{tpu_custom_call.1} parent=1 // pred_check
      %p269 = pneg %p76
    $region47: #{tpu_custom_call.1} parent=1 // pred_check_branch
      %271 = sbr.rel (%p269) target = $region49
    $region48: #{tpu_custom_call.1} parent=1 // pred_region
      %v272 = vld [vmem:[#allocation2] sm:$0xff]
      %v273 = vld [vmem:[%s6] sm:$0x1]
      %v275 = vperm.slane %v273, 0
      %v277 = vadd.f32 %v272, %v275
      %278 = vmax.xlane.f32.xlu0 %v277
      %v279 = vpop.xlane.xlu0 %278
      %v280 = vsub.f32 %v277, %v279
      %v281 = vmul.f32 %v280, 1.442695
      %v282 = vpow.pop %v281
      %283 = vadd.xlane.f32.xlu0 %v282
      %v284 = vpop.xlane.xlu0 %283
      %v285 = vrcp.pop %v284
      %v286 = vmul.f32 %v282, %v285
      %287 = vst [vmem:[#allocation9] sm:$0xff] %v286
    $region49: #{tpu_custom_call.1} parent=1 // pred_fallthru
      _
    // Predicated region
    $region50: #{tpu_custom_call.1} parent=1 // pred_check
      _
    $region51: #{tpu_custom_call.1} parent=1 // pred_check_branch
      %289 = sbr.rel (0) target = $region53
    $region52: #{tpu_custom_call.1} parent=1 // pred_region
      %291 = vsyncadd [#allocation5], 0
      %s293 = sshll.u32 [#allocation9], 4
      %s294 = int_to_ptr.vmem [resolvable:$true] %s293
      %s295 = sshll.u32 %s7, 4
      %s296 = int_to_ptr.hbm [resolvable:$true] %s295
      %298 = dma.vmem_to_hbm [thread:$0]  %s294, 128, %s296, [#allocation5]
    $region53: #{tpu_custom_call.1} parent=1 // pred_fallthru
      _
    // Predicated region
    $region54: #{tpu_custom_call.1} parent=1 // pred_check
      _
    $region55: #{tpu_custom_call.1} parent=1 // pred_check_branch
      %300 = sbr.rel (0) target = $region57
    $region56: #{tpu_custom_call.1} parent=1 // pred_region
      %302 = vsyncadd [#allocation11], 0
      %s304 = sshll.u32 [#allocation10], 4
      %s305 = int_to_ptr.vmem [resolvable:$true] %s304
      %s306 = sshll.u32 %s8, 4
      %s307 = int_to_ptr.hbm [resolvable:$true] %s306
      %309 = dma.vmem_to_hbm [thread:$0]  %s305, 128, %s307, [#allocation11]
    $region57: #{tpu_custom_call.1} parent=1 // pred_fallthru
      _
    // Predicated region
    $region58: #{tpu_custom_call.1} parent=1 // pred_check
      _
    $region59: #{tpu_custom_call.1} parent=1 // pred_check_branch
      %311 = sbr.rel (0) target = $region61
    $region60: #{tpu_custom_call.1} parent=1 // pred_region
      %313 = dma.done [#allocation5], 128
    $region61: #{tpu_custom_call.1} parent=1 // pred_fallthru
      _
    // Predicated region
    $region62: #{tpu_custom_call.1} parent=1 // pred_check
      _
    $region63: #{tpu_custom_call.1} parent=1 // pred_check_branch
      %315 = sbr.rel (0) target = $region65
    $region64: #{tpu_custom_call.1} parent=1 // pred_region
      %317 = dma.done [#allocation11], 128
    $region65: #{tpu_custom_call.1} parent=1 // pred_fallthru
      _
    %318 = vsyncpa [#allocation4], 1
    %319 = vsyncpa [#allocation7], 1
    %320 = vsyncpa [#allocation5], 1
    %321 = vsyncpa [#allocation11], 1

// kernel: tpu_custom_call.1
$region0: #{tpu_custom_call.1}
  #allocation0 [shape = 'u32[]', space=smem, size = 0x4, offset = 0x4, fixed_abs, tag = 'smem constant byte address 0x4 - core index']
  #allocation1 [shape = 'u32[72,128]{1,0:T(1,128)}', space=vmem, size = 0x9000, scoped, tag = 'internal scratch']
  #allocation2 [shape = 'f32[8,128]{1,0:T(8,128)}', space=vmem, size = 0x1000, scoped, tag = 'scratch operand']
  %s0 = inlined_call_operand.hbm [shape: bf16[8,16], index: 0, kind: input, shape index: {}]
  %s1 = inlined_call_operand.hbm [shape: bf16[16,128], index: 1, kind: input, shape index: {}]
  %s2 = inlined_call_operand.vmem [shape: f32[1,128], index: 2, kind: input, shape index: {}]
  %s3 = inlined_call_operand.vmem [shape: f32[1,128], index: 3, kind: input, shape index: {}]
  %s4 = inlined_call_operand.vmem [shape: f32[1,128], index: 4, kind: input, shape index: {}]
  %s5 = inlined_call_operand.hbm [shape: bf16[128,128], index: 5, kind: input, shape index: {}]
  %s6 = inlined_call_operand.vmem [shape: f32[1,128], index: 6, kind: input, shape index: {}]
  %s7 = inlined_call_operand.hbm [shape: f32[8,128], index: 7, kind: output, shape index: {0}]
  %s8 = inlined_call_operand.hbm [shape: f32[8,128], index: 8, kind: output, shape index: {1}]
  %9 = xla_tuple %s7, %s8
  %s10 = sld [smem:[#allocation0]]
  $region66: #{tpu_custom_call.1} parent=0
    _
  %s12 = ssub.s32 1, %s10
  %s13 = scalar_select 0, %s12, %s10
  $region1: #{tpu_custom_call.1} parent=0
    #allocation3 [shape = 'u8[2048]{0}', space=vmem, size = 0x800, scoped, tag = 'input window, operand 0, single buffered']
    #allocation4 [shape = 's32[1]{0}', space=sflag, size = 0x4, scoped, tag = 'scoped memory for tpu_custom_call.1']
    #allocation5 [shape = 's32[1]{0}', space=sflag, size = 0x4, scoped, tag = 'scoped memory for tpu_custom_call.1']
    #allocation6 [shape = 'u8[4096]{0}', space=vmem, size = 0x1000, scoped, tag = 'input window, operand 1, single buffered']
    #allocation7 [shape = 's32[1]{0}', space=sflag, size = 0x4, scoped, tag = 'scoped memory for tpu_custom_call.1']
    #allocation8 [shape = 'u8[32768]{0}', space=vmem, size = 0x8000, scoped, tag = 'input window, operand 5, single buffered']
    #allocation9 [shape = 'u8[4096]{0}', space=vmem, size = 0x1000, scoped, tag = 'output window, operand 0, single buffered']
    #allocation10 [shape = 'u8[4096]{0}', space=vmem, size = 0x1000, scoped, tag = 'output window, operand 1, single buffered']
    #allocation11 [shape = 's32[1]{0}', space=sflag, size = 0x4, scoped, tag = 'scoped memory for tpu_custom_call.1']
    %14 = vsyncpa [#allocation4], 0
    %15 = vsyncpa [#allocation7], 0
    %16 = vsyncpa [#allocation5], 0
    %17 = vsyncpa [#allocation11], 0
    // Predicated region
    $region2: #{tpu_custom_call.1} parent=1 // pred_check
      _
    $region3: #{tpu_custom_call.1} parent=1 // pred_check_branch
      %19 = sbr.rel (0) target = $region5
    $region4: #{tpu_custom_call.1} parent=1 // pred_region
      %21 = vsyncadd [#allocation4], 0
      %s23 = sshll.u32 %s0, 4
      %s24 = int_to_ptr.hbm [resolvable:$true] %s23
      %s25 = sshll.u32 [#allocation3], 4
      %s26 = int_to_ptr.vmem [resolvable:$true] %s25
      %28 = dma.hbm_to_vmem [thread:$0]  %s24, 64, %s26, [#allocation4]
    $region5: #{tpu_custom_call.1} parent=1 // pred_fallthru
      _
    // Predicated region
    $region6: #{tpu_custom_call.1} parent=1 // pred_check
      _
    $region7: #{tpu_custom_call.1} parent=1 // pred_check_branch
      %30 = sbr.rel (0) target = $region9
    $region8: #{tpu_custom_call.1} parent=1 // pred_region
      %32 = vsyncadd [#allocation7], 0
      %s33 = sshll.u32 %s1, 4
      %s34 = int_to_ptr.hbm [resolvable:$true] %s33
      %s35 = sshll.u32 [#allocation6], 4
      %s36 = int_to_ptr.vmem [resolvable:$true] %s35
      %41 = dma.hbm_to_vmem [thread:$0]  %s34, 128, %s36, [#allocation7], 64, 64, 4
    $region9: #{tpu_custom_call.1} parent=1 // pred_fallthru
      _
    // Predicated region
    $region10: #{tpu_custom_call.1} parent=1 // pred_check
      _
    $region11: #{tpu_custom_call.1} parent=1 // pred_check_branch
      %43 = sbr.rel (0) target = $region13
    $region12: #{tpu_custom_call.1} parent=1 // pred_region
      _
    $region13: #{tpu_custom_call.1} parent=1 // pred_fallthru
      _
    // Predicated region
    $region14: #{tpu_custom_call.1} parent=1 // pred_check
      _
    $region15: #{tpu_custom_call.1} parent=1 // pred_check_branch
      %45 = sbr.rel (0) target = $region17
    $region16: #{tpu_custom_call.1} parent=1 // pred_region
      _
    $region17: #{tpu_custom_call.1} parent=1 // pred_fallthru
      _
    // Predicated region
    $region18: #{tpu_custom_call.1} parent=1 // pred_check
      _
    $region19: #{tpu_custom_call.1} parent=1 // pred_check_branch
      %47 = sbr.rel (0) target = $region21
    $region20: #{tpu_custom_call.1} parent=1 // pred_region
      _
    $region21: #{tpu_custom_call.1} parent=1 // pred_fallthru
      _
    // Predicated region
    $region22: #{tpu_custom_call.1} parent=1 // pred_check
      _
    $region23: #{tpu_custom_call.1} parent=1 // pred_check_branch
      %49 = sbr.rel (0) target = $region25
    $region24: #{tpu_custom_call.1} parent=1 // pred_region
      %51 = vsyncadd [#allocation7], 0
      %s52 = sshll.u32 %s5, 4
      %s53 = int_to_ptr.hbm [resolvable:$true] %s52
      %s54 = sshll.u32 [#allocation8], 4
      %s55 = int_to_ptr.vmem [resolvable:$true] %s54
      %60 = dma.hbm_to_vmem [thread:$0]  %s53, 1024, %s55, [#allocation7], 64, 64, 4
    $region25: #{tpu_custom_call.1} parent=1 // pred_fallthru
      _
    // Predicated region
    $region26: #{tpu_custom_call.1} parent=1 // pred_check
      _
    $region27: #{tpu_custom_call.1} parent=1 // pred_check_branch
      %62 = sbr.rel (0) target = $region29
    $region28: #{tpu_custom_call.1} parent=1 // pred_region
      _
    $region29: #{tpu_custom_call.1} parent=1 // pred_fallthru
      _
    // Predicated region
    $region30: #{tpu_custom_call.1} parent=1 // pred_check
      _
    $region31: #{tpu_custom_call.1} parent=1 // pred_check_branch
      %64 = sbr.rel (0) target = $region33
    $region32: #{tpu_custom_call.1} parent=1 // pred_region
      %66 = dma.done [#allocation4], 64
    $region33: #{tpu_custom_call.1} parent=1 // pred_fallthru
      _
    // Predicated region
    $region34: #{tpu_custom_call.1} parent=1 // pred_check
      _
    $region35: #{tpu_custom_call.1} parent=1 // pred_check_branch
      %68 = sbr.rel (0) target = $region37
    $region36: #{tpu_custom_call.1} parent=1 // pred_region
      %70 = dma.done [#allocation7], 128
    $region37: #{tpu_custom_call.1} parent=1 // pred_fallthru
      _
    // Predicated region
    $region38: #{tpu_custom_call.1} parent=1 // pred_check
      _
    $region39: #{tpu_custom_call.1} parent=1 // pred_check_branch
      %72 = sbr.rel (0) target = $region41
    $region40: #{tpu_custom_call.1} parent=1 // pred_region
      %74 = dma.done [#allocation7], 1024
    $region41: #{tpu_custom_call.1} parent=1 // pred_fallthru
      _
    %p76 = scmp.eq.s32.totalorder 0, 0
    // Predicated region
    $region42: #{tpu_custom_call.1} parent=1 // pred_check
      %p77 = pneg %p76
    $region43: #{tpu_custom_call.1} parent=1 // pred_check_branch
      %79 = sbr.rel (%p77) target = $region45
    $region44: #{tpu_custom_call.1} parent=1 // pred_region
      %80 = vst [vmem:[#allocation2] sm:$0xff] 0.0
    $region45: #{tpu_custom_call.1} parent=1 // pred_fallthru
      _
    %v81 = vld [vmem:[#allocation3] sm:$0xf]
    %v82 = vld [vmem:[#allocation6] sm:$0xf]
    %v83 = vld [vmem:[#allocation6 + $0x4] sm:$0xf]
    %v84 = vld [vmem:[%s2] sm:$0x1]
    %v86 = vperm.slane %v84, 0
    %v90 = vunpack.c.l.b16 %v82
    %v91 = vunpack.c.l.b16 %v83
    %v92 = vpack.c.b16 %v91, %v90
    %vm94 = vcmask 130048
    %v96 = vsel %vm94, %v81, 0
    %98 = vmatpush.bf16.msra.mxu0 0
    %99 = vmatpush.bf16.msra.mxu0 0
    %100 = vmatpush.bf16.msra.mxu0 0
    %101 = vmatpush.bf16.msra.mxu0 0
    %102 = vmatpush.bf16.msra.mxu0 0
    %103 = vmatpush.bf16.msra.mxu0 0
    %104 = vmatpush.bf16.msra.mxu0 0
    %105 = vmatpush.bf16.msra.mxu0 %v92
    %106 = vmatmul.bf16.gmra.mxu0 %v96
    %v107 = vpop.f32.mrf.mxu0
    %v108 = vadd.f32 %v86, %v107
    %v109 = vpop.f32.mrf.mxu0
    %110 = vdwg.mxu0
    %v111 = vmax.f32 %v108, 0.0
    %vm112 = vcmask 64512
    %v114 = vsel %vm112, 1.0, 0
    %116 = vmatpush.msra.mxu0 0.0
    %117 = vmatpush.msra.mxu0 0.0
    %118 = vmatpush.msra.mxu0 0.0
    %119 = vmatpush.msra.mxu0 0.0
    %120 = vmatpush.msra.mxu0 0.0
    %121 = vmatpush.msra.mxu0 0.0
    %122 = vmatpush.msra.mxu0 0.0
    %123 = vmatpush.msra.mxu0 0.0
    %124 = vmatpush.msra.mxu0 0.0
    %125 = vmatpush.msra.mxu0 0.0
    %126 = vmatpush.msra.mxu0 0.0
    %127 = vmatpush.msra.mxu0 0.0
    %128 = vmatpush.msra.mxu0 0.0
    %129 = vmatpush.msra.mxu0 0.0
    %130 = vmatpush.msra.mxu0 0.0
    %131 = vmatpush.msra.mxu0 %v111
    %132 = vmatmul.f32.gmra.mxu0 %v114
    %v133 = vpop.f32.mrf.mxu0
    %v134 = vadd.f32 0.0, %v133
    %135 = vdwg.mxu0
    %v136 = vmul.f32 %v111, %v111
    %137 = vmatpush.msra.mxu0 0.0
    %138 = vmatpush.msra.mxu0 0.0
    %139 = vmatpush.msra.mxu0 0.0
    %140 = vmatpush.msra.mxu0 0.0
    %141 = vmatpush.msra.mxu0 0.0
    %142 = vmatpush.msra.mxu0 0.0
    %143 = vmatpush.msra.mxu0 0.0
    %144 = vmatpush.msra.mxu0 0.0
    %145 = vmatpush.msra.mxu0 0.0
    %146 = vmatpush.msra.mxu0 0.0
    %147 = vmatpush.msra.mxu0 0.0
    %148 = vmatpush.msra.mxu0 0.0
    %149 = vmatpush.msra.mxu0 0.0
    %150 = vmatpush.msra.mxu0 0.0
    %151 = vmatpush.msra.mxu0 0.0
    %152 = vmatpush.msra.mxu0 %v136
    %153 = vmatmul.f32.gmra.mxu0 %v114
    %v154 = vpop.f32.mrf.mxu0
    %v155 = vadd.f32 0.0, %v154
    %156 = vdwg.mxu0
    %v157 = vmul.f32 %v134, 0.125
    %v158 = vmul.f32 %v155, 0.125
    %v159 = vmul.f32 %v157, %v157
    %v160 = vsub.f32 %v158, %v159
    %v161 = vmax.f32 %v160, 0.0
    %v162 = vperm.slane %v157, 0
    %v163 = vsub.f32 %v111, %v162
    %v164 = vadd.f32 %v161, 1e-05
    %v165 = vrsqrt.pop %v164
    %v166 = vmul.f32 %v165, %v164
    %v167 = vmul.f32 %v166, %v165
    %v168 = vmul.f32 0.5, %v167
    %v169 = vsub.f32 1.5, %v168
    %v170 = vmul.f32 %v165, %v169
    %vm171 = vweird.f32 %v164
    %vm172 = vweird.f32 %v165
    %vm173 = vmor %vm171, %vm172
    %v174 = vsel %vm173, %v165, %v170
    %v175 = vperm.slane %v174, 0
    %v176 = vmul.f32 %v163, %v175
    %v177 = vld [vmem:[%s3] sm:$0x1]
    %v179 = vperm.slane %v177, 0
    %v181 = vmul.f32 %v176, %v179
    %v182 = vld [vmem:[%s4] sm:$0x1]
    %v184 = vperm.slane %v182, 0
    %v186 = vadd.f32 %v181, %v184
    %187 = vst [vmem:[#allocation10] sm:$0xff] %v186
    %v188 = vld [vmem:[#allocation2] sm:$0xff]
    %v189 = vpack.c.bf16 %v186, %v186
    %v190 = vld [vmem:[#allocation8] sm:$0xf]
    %v191 = vld [vmem:[#allocation8 + $0x4] sm:$0xf]
    %v192 = vld [vmem:[#allocation8 + $0x8] sm:$0xf]
    %v193 = vld [vmem:[#allocation8 + $0xc] sm:$0xf]
    %v194 = vld [vmem:[#allocation8 + $0x10] sm:$0xf]
    %v195 = vld [vmem:[#allocation8 + $0x14] sm:$0xf]
    %v196 = vld [vmem:[#allocation8 + $0x18] sm:$0xf]
    %v197 = vld [vmem:[#allocation8 + $0x1c] sm:$0xf]
    %v198 = vld [vmem:[#allocation8 + $0x20] sm:$0xf]
    %v199 = vld [vmem:[#allocation8 + $0x24] sm:$0xf]
    %v200 = vld [vmem:[#allocation8 + $0x28] sm:$0xf]
    %v201 = vld [vmem:[#allocation8 + $0x2c] sm:$0xf]
    %v202 = vld [vmem:[#allocation8 + $0x30] sm:$0xf]
    %v203 = vld [vmem:[#allocation8 + $0x34] sm:$0xf]
    %v204 = vld [vmem:[#allocation8 + $0x38] sm:$0xf]
    %v205 = vld [vmem:[#allocation8 + $0x3c] sm:$0xf]
    %v222 = vunpack.c.l.b16 %v190
    %v223 = vunpack.c.l.b16 %v191
    %v224 = vunpack.c.l.b16 %v192
    %v225 = vunpack.c.l.b16 %v193
    %v226 = vunpack.c.l.b16 %v194
    %v227 = vunpack.c.l.b16 %v195
    %v228 = vunpack.c.l.b16 %v196
    %v229 = vunpack.c.l.b16 %v197
    %v230 = vunpack.c.l.b16 %v198
    %v231 = vunpack.c.l.b16 %v199
    %v232 = vunpack.c.l.b16 %v200
    %v233 = vunpack.c.l.b16 %v201
    %v234 = vunpack.c.l.b16 %v202
    %v235 = vunpack.c.l.b16 %v203
    %v236 = vunpack.c.l.b16 %v204
    %v237 = vunpack.c.l.b16 %v205
    %v238 = vpack.c.b16 %v223, %v222
    %v239 = vpack.c.b16 %v225, %v224
    %v240 = vpack.c.b16 %v227, %v226
    %v241 = vpack.c.b16 %v229, %v228
    %v242 = vpack.c.b16 %v231, %v230
    %v243 = vpack.c.b16 %v233, %v232
    %v244 = vpack.c.b16 %v235, %v234
    %v245 = vpack.c.b16 %v237, %v236
    %254 = vmatpush.bf16.msra.mxu0 %v245
    %255 = vmatpush.bf16.msra.mxu0 %v244
    %256 = vmatpush.bf16.msra.mxu0 %v243
    %257 = vmatpush.bf16.msra.mxu0 %v242
    %258 = vmatpush.bf16.msra.mxu0 %v241
    %259 = vmatpush.bf16.msra.mxu0 %v240
    %260 = vmatpush.bf16.msra.mxu0 %v239
    %261 = vmatpush.bf16.msra.mxu0 %v238
    %262 = vmatmul.bf16.gmra.mxu0 %v189
    %v263 = vpop.f32.mrf.mxu0
    %v264 = vadd.f32 0.0, %v263
    %v265 = vpop.f32.mrf.mxu0
    %266 = vdwg.mxu0
    %v267 = vadd.f32 %v188, %v264
    %268 = vst [vmem:[#allocation2] sm:$0xff] %v267
    // Predicated region
    $region46: #{tpu_custom_call.1} parent=1 // pred_check
      %p269 = pneg %p76
    $region47: #{tpu_custom_call.1} parent=1 // pred_check_branch
      %271 = sbr.rel (%p269) target = $region49
    $region48: #{tpu_custom_call.1} parent=1 // pred_region
      %v272 = vld [vmem:[#allocation2] sm:$0xff]
      %v273 = vld [vmem:[%s6] sm:$0x1]
      %v275 = vperm.slane %v273, 0
      %v277 = vadd.f32 %v272, %v275
      %278 = vmax.xlane.f32.xlu0 %v277
      %v279 = vpop.xlane.xlu0 %278
      %v280 = vsub.f32 %v277, %v279
      %v281 = vmul.f32 %v280, 1.442695
      %v282 = vpow.pop %v281
      %283 = vadd.xlane.f32.xlu0 %v282
      %v284 = vpop.xlane.xlu0 %283
      %v285 = vrcp.pop %v284
      %v286 = vmul.f32 %v282, %v285
      %287 = vst [vmem:[#allocation9] sm:$0xff] %v286
    $region49: #{tpu_custom_call.1} parent=1 // pred_fallthru
      _
    // Predicated region
    $region50: #{tpu_custom_call.1} parent=1 // pred_check
      _
    $region51: #{tpu_custom_call.1} parent=1 // pred_check_branch
      %289 = sbr.rel (0) target = $region53
    $region52: #{tpu_custom_call.1} parent=1 // pred_region
      %291 = vsyncadd [#allocation5], 0
      %s293 = sshll.u32 [#allocation9], 4
      %s294 = int_to_ptr.vmem [resolvable:$true] %s293
      %s295 = sshll.u32 %s7, 4
      %s296 = int_to_ptr.hbm [resolvable:$true] %s295
      %298 = dma.vmem_to_hbm [thread:$0]  %s294, 128, %s296, [#allocation5]
    $region53: #{tpu_custom_call.1} parent=1 // pred_fallthru
      _
    // Predicated region
    $region54: #{tpu_custom_call.1} parent=1 // pred_check
      _
    $region55: #{tpu_custom_call.1} parent=1 // pred_check_branch
      %300 = sbr.rel (0) target = $region57
    $region56: #{tpu_custom_call.1} parent=1 // pred_region
      %302 = vsyncadd [#allocation11], 0
      %s304 = sshll.u32 [#allocation10], 4
      %s305 = int_to_ptr.vmem [resolvable:$true] %s304
      %s306 = sshll.u32 %s8, 4
      %s307 = int_to_ptr.hbm [resolvable:$true] %s306
      %309 = dma.vmem_to_hbm [thread:$0]  %s305, 128, %s307, [#allocation11]
    $region57: #{tpu_custom_call.1} parent=1 // pred_fallthru
      _
    // Predicated region
    $region58: #{tpu_custom_call.1} parent=1 // pred_check
      _
    $region59: #{tpu_custom_call.1} parent=1 // pred_check_branch
      %311 = sbr.rel (0) target = $region61
    $region60: #{tpu_custom_call.1} parent=1 // pred_region
      %313 = dma.done [#allocation5], 128
    $region61: #{tpu_custom_call.1} parent=1 // pred_fallthru
      _
    // Predicated region
    $region62: #{tpu_custom_call.1} parent=1 // pred_check
      _
    $region63: #{tpu_custom_call.1} parent=1 // pred_check_branch
      %315 = sbr.rel (0) target = $region65
    $region64: #{tpu_custom_call.1} parent=1 // pred_region
      %317 = dma.done [#allocation11], 128
    $region65: #{tpu_custom_call.1} parent=1 // pred_fallthru
      _
    %318 = vsyncpa [#allocation4], 1
    %319 = vsyncpa [#allocation7], 1
    %320 = vsyncpa [#allocation5], 1
    %321 = vsyncpa [#allocation11], 1

</llo_original>
